<compile_context>
chip_gen: v6e
topology: v6e:2x2x1
jax: 0.10.0
libtpu: 0.0.40
codegen_flags: <defaults>
</compile_context>

<pallas_src>
import jax
import jax.numpy as jnp
from jax import lax
from jax.experimental import pallas as pl
from jax.experimental.pallas import tpu as pltpu


def _round_up(x: int, m: int) -> int:
    return (x + m - 1) // m * m


def _make_loss_kernel(tb: int, c: int, b_true: int, has_ragged: bool):
    def kernel(x_ref, lab_ref, o_ref):
        i = pl.program_id(0)

        x = x_ref[...].astype(jnp.float32)             # (TB, C), cast in-kernel
        labels = lab_ref[...]                          # (TB, 1) int32

        col = lax.broadcasted_iota(jnp.int32, (tb, c), 1)
        onehot = col == labels                         # (TB, C) bool

        # single one-hot select reused by both loss terms
        x_sel = jnp.where(onehot, x, 0.0)                        # (TB, C)
        picked_x = jnp.sum(x_sel, axis=1, keepdims=True)         # (TB, 1) == x[label]

        # ---- term 1: numerator of mean(tempOut) ----
        temp = x - 2.0 * x_sel                         # == where(onehot, -x, x)
        # (only diverges if |x[label]| > f32max/2 -> -inf; irrelevant for real logits)
        temp = jnp.where(temp > -1.0, temp + 2.0, jnp.zeros_like(temp))

        # ---- term 2: numerator of CrossEntropy(LogSoftmax(x), labels) ----
        m1 = jnp.max(x, axis=1, keepdims=True)
        e1 = jnp.exp(x - m1)
        s1 = jnp.sum(e1, axis=1, keepdims=True)
        log_s1 = jnp.log(s1)
        lse1 = log_s1 + m1                             # first log-softmax denom
        # second log-softmax reuses the first exp pass (equal up to ULPs):
        #   ls1 = x - lse1, max(ls1) == m1 - lse1, exp(ls1 - m2) ~= e1
        lse2 = log_s1 + (m1 - lse1)
        per_row_ce = lse2 - (picked_x - lse1)          # (TB, 1) == -log_softmax2[label]

        def write(sum_temp, sum_ce):
            # place the two partial sums on sublane 0 / 1 (lane 0) of this block's
            # (8,128)-aligned output tile; the wrapper reads [i, 0, 0] and [i, 1, 0].
            sub = lax.broadcasted_iota(jnp.int32, (1, 8, 128), 1)
            o_ref[...] = jnp.where(sub == 0, sum_temp, sum_ce)

        if has_ragged:
            is_last = i == pl.num_programs(0) - 1

            @pl.when(is_last)
            def _():
                # mask rows past the true batch; jnp.where (select) keeps undefined
                # tail-row contents (possibly NaN/Inf) out of the sums.
                row = lax.broadcasted_iota(jnp.int32, (tb, 1), 0) + i * tb
                valid = row < b_true
                write(jnp.sum(jnp.where(valid, temp, 0.0)),
                      jnp.sum(jnp.where(valid, per_row_ce, 0.0)))

            @pl.when(jnp.logical_not(is_last))
            def _():
                write(jnp.sum(temp), jnp.sum(per_row_ce))
        else:
            write(jnp.sum(temp), jnp.sum(per_row_ce))

    return kernel


def _choose_tile(b: int, c: int, itemsize: int, block_rows=None):
    """Pick batch-tile rows + scoped-VMEM limit from the chip's VMEM capacity."""
    sub = max(8, 32 // itemsize)                 # sublane packing: 8 f32 / 16 bf16 / 32 i8
    try:
        vmem_cap = int(pltpu.get_tpu_info().vmem_capacity_bytes)
    except Exception:
        vmem_cap = 64 << 20                      # conservative fallback = v7x per-TC VMEM
    vmem_limit = int(min(vmem_cap // 2, 64 << 20))
    usable = max(4 << 20, vmem_limit - (4 << 20))   # headroom: out blocks + compiler scratch

    lane_c = _round_up(c, 128)                   # VMEM lane padding of the logits block
    per_row_vmem = 2 * (lane_c * itemsize + 128 * 4)  # dbl-buffered logits + (TB,1) labels
    rows_fit = max(sub, (usable // per_row_vmem) // sub * sub)
    # amortization of the ~0.35 us/step overhead plateaus at MiB-scale blocks;
    # cap each logits block at ~16 MiB of HBM bytes.
    rows_hbm = max(sub, ((16 << 20) // max(1, c * itemsize)) // sub * sub)
    rows_cap = min(rows_fit, rows_hbm)
    if block_rows is not None:
        rows_cap = min(rows_cap, max(sub, (block_rows // sub) * sub))
    tb = b if b <= rows_cap else rows_cap        # never a block taller than the array
    return tb, vmem_limit


def custom_loss(output: jax.Array, labels: jax.Array, p: float = 0.3,
                block_rows=None) -> jax.Array:
    """output: (B, C) float, labels: (B,) int -> scalar float32 loss."""
    b, c = output.shape
    itemsize = jnp.dtype(output.dtype).itemsize
    tb, vmem_limit = _choose_tile(b, c, itemsize, block_rows)
    num_blocks = -(-b // tb)
    has_ragged = (b % tb) != 0

    labels2d = labels.reshape(b, 1).astype(jnp.int32)

    kernel = _make_loss_kernel(tb, c, b, has_ragged)
    partials = pl.pallas_call(
        kernel,
        out_shape=jax.ShapeDtypeStruct((num_blocks, 8, 128), jnp.float32),
        grid=(num_blocks,),
        in_specs=[
            pl.BlockSpec((tb, c), lambda i: (i, 0)),   # logits tile (native dtype)
            pl.BlockSpec((tb, 1), lambda i: (i, 0)),   # labels tile
        ],
        out_specs=pl.BlockSpec((1, 8, 128), lambda i: (i, 0, 0)),
        compiler_params=pltpu.CompilerParams(
            dimension_semantics=("parallel",),
            vmem_limit_bytes=vmem_limit),
    )(output, labels2d)

    sum_temp = jnp.sum(partials[:, 0, 0])
    sum_ce = jnp.sum(partials[:, 1, 0])
    p = float(p)
    return p * sum_temp / (b * c) + (1.0 - p) * sum_ce / b


def _reference(output, labels, p=0.3):
    """Pure-JAX reference mirroring the PyTorch module."""
    b, c = output.shape
    onehot = jax.nn.one_hot(labels, c, dtype=bool)
    temp = jnp.where(onehot, -output, output)
    temp = jnp.where(temp > -1, temp + 2, jnp.zeros_like(temp))
    ls1 = jax.nn.log_softmax(output, axis=1)
    ls2 = jax.nn.log_softmax(ls1, axis=1)
    ce = -jnp.mean(jnp.take_along_axis(ls2, labels[:, None], axis=1))
    return p * jnp.mean(temp) + (1 - p) * ce


if __name__ == "__main__":
    key = jax.random.PRNGKey(0)

    # (batch, classes) logits + integer labels, consistent with the module
    k1, k2 = jax.random.split(key)
    B, C = 8, 32
    output = jax.random.normal(k1, (B, C), dtype=jnp.float32)
    labels = jax.random.randint(k2, (B,), 0, C, dtype=jnp.int32)

    loss = custom_loss(output, labels, p=0.3)
    jax.block_until_ready(loss)
    ref = _reference(output, labels, p=0.3)
    assert jnp.allclose(loss, ref, atol=1e-5, rtol=1e-5), (loss, ref)

    # exercise the multi-step grid + ragged-last-block masking path (no padding)
    k3, k4 = jax.random.split(k2)
    B2, C2 = 20, 32
    output2 = jax.random.normal(k3, (B2, C2), dtype=jnp.float32)
    labels2 = jax.random.randint(k4, (B2,), 0, C2, dtype=jnp.int32)
    loss2 = custom_loss(output2, labels2, p=0.3, block_rows=8)   # 3 steps, ragged by 4 rows
    jax.block_until_ready(loss2)
    ref2 = _reference(output2, labels2, p=0.3)
    assert jnp.allclose(loss2, ref2, atol=1e-5, rtol=1e-5), (loss2, ref2)

    print("KERNEL_OK")
</pallas_src>

<mosaic_0001>
module attributes {stable_mosaic.version = 11 : i64} {
  func.func @kernel(%arg0: i32, %arg1: memref<8x32xf32, #tpu.memory_space<vmem>>, %arg2: memref<8x1xi32, #tpu.memory_space<vmem>>, %arg3: memref<1x8x128xf32, #tpu.memory_space<vmem>>) attributes {dimension_semantics = [#tpu.dimension_semantics<parallel>], iteration_bounds = array<i64: 1>, scalar_prefetch = 0 : i64, scratch_operands = 0 : i64, tpu.core_type = #tpu.core_type<tc>, window_params = [{transform_indices = @transform_0, window_bounds = array<i64: 8, 32>}, {transform_indices = @transform_1, window_bounds = array<i64: 8, 1>}, {transform_indices = @transform_2, window_bounds = array<i64: 1, 8, 128>}]} {
    %c0 = arith.constant 0 : index
    %c0_0 = arith.constant 0 : index
    %0 = vector.load %arg1[%c0, %c0_0] : memref<8x32xf32, #tpu.memory_space<vmem>>, vector<8x32xf32>
    %c0_1 = arith.constant 0 : index
    %c0_2 = arith.constant 0 : index
    %1 = vector.load %arg2[%c0_1, %c0_2] : memref<8x1xi32, #tpu.memory_space<vmem>>, vector<8x1xi32>
    %2 = tpu.iota {dimensions = array<i32: 1>} : vector<8x32xi32>
    %3 = vector.broadcast %1 : vector<8x1xi32> to vector<8x32xi32>
    %4 = arith.cmpi eq, %2, %3 : vector<8x32xi32>
    %cst = arith.constant 0.000000e+00 : f32
    %5 = vector.broadcast %cst : f32 to vector<8x32xf32>
    %6 = arith.select %4, %0, %5 : vector<8x32xi1>, vector<8x32xf32>
    %cst_3 = arith.constant dense<0.000000e+00> : vector<8xf32>
    %7 = vector.multi_reduction <add>, %6, %cst_3 [1] : vector<8x32xf32> to vector<8xf32>
    %8 = vector.shape_cast %7 : vector<8xf32> to vector<8x1xf32>
    %cst_4 = arith.constant 2.000000e+00 : f32
    %9 = vector.broadcast %cst_4 : f32 to vector<8x32xf32>
    %10 = arith.mulf %9, %6 : vector<8x32xf32>
    %11 = arith.subf %0, %10 : vector<8x32xf32>
    %cst_5 = arith.constant -1.000000e+00 : f32
    %12 = vector.broadcast %cst_5 : f32 to vector<8x32xf32>
    %13 = arith.cmpf ogt, %11, %12 : vector<8x32xf32>
    %cst_6 = arith.constant 2.000000e+00 : f32
    %14 = vector.broadcast %cst_6 : f32 to vector<8x32xf32>
    %15 = arith.addf %11, %14 : vector<8x32xf32>
    %cst_7 = arith.constant 0.000000e+00 : f32
    %16 = vector.broadcast %cst_7 : f32 to vector<8x32xf32>
    %17 = arith.select %13, %15, %16 : vector<8x32xi1>, vector<8x32xf32>
    %cst_8 = arith.constant dense<0xFF800000> : vector<8xf32>
    %18 = vector.multi_reduction <maximumf>, %0, %cst_8 [1] : vector<8x32xf32> to vector<8xf32>
    %19 = vector.shape_cast %18 : vector<8xf32> to vector<8x1xf32>
    %20 = vector.broadcast %19 : vector<8x1xf32> to vector<8x32xf32>
    %21 = arith.subf %0, %20 : vector<8x32xf32>
    %22 = math.exp %21 : vector<8x32xf32>
    %cst_9 = arith.constant dense<0.000000e+00> : vector<8xf32>
    %23 = vector.multi_reduction <add>, %22, %cst_9 [1] : vector<8x32xf32> to vector<8xf32>
    %24 = vector.shape_cast %23 : vector<8xf32> to vector<8x1xf32>
    %25 = math.log %24 : vector<8x1xf32>
    %26 = arith.addf %25, %19 : vector<8x1xf32>
    %27 = arith.subf %19, %26 : vector<8x1xf32>
    %28 = arith.addf %25, %27 : vector<8x1xf32>
    %29 = arith.subf %8, %26 : vector<8x1xf32>
    %30 = arith.subf %28, %29 : vector<8x1xf32>
    %31 = vector.shape_cast %17 : vector<8x32xf32> to vector<1x8x32xf32>
    %cst_10 = arith.constant dense<0.000000e+00> : vector<1xf32>
    %32 = vector.multi_reduction <add>, %31, %cst_10 [1, 2] : vector<1x8x32xf32> to vector<1xf32>
    %33 = vector.shape_cast %32 : vector<1xf32> to vector<1x1x1xf32>
    %34 = vector.extract %33[0, 0, 0] : f32 from vector<1x1x1xf32>
    %35 = vector.shape_cast %30 : vector<8x1xf32> to vector<1x8x1xf32>
    %cst_11 = arith.constant dense<0.000000e+00> : vector<1xf32>
    %36 = vector.multi_reduction <add>, %35, %cst_11 [1, 2] : vector<1x8x1xf32> to vector<1xf32>
    %37 = vector.shape_cast %36 : vector<1xf32> to vector<1x1x1xf32>
    %38 = vector.extract %37[0, 0, 0] : f32 from vector<1x1x1xf32>
    %39 = tpu.iota {dimensions = array<i32: 1>} : vector<1x8x128xi32>
    %c0_i32 = arith.constant 0 : i32
    %40 = vector.broadcast %c0_i32 : i32 to vector<1x8x128xi32>
    %41 = arith.cmpi eq, %39, %40 : vector<1x8x128xi32>
    %42 = vector.broadcast %34 : f32 to vector<1x8x128xf32>
    %43 = vector.broadcast %38 : f32 to vector<1x8x128xf32>
    %44 = arith.select %41, %42, %43 : vector<1x8x128xi1>, vector<1x8x128xf32>
    %c0_12 = arith.constant 0 : index
    %c0_13 = arith.constant 0 : index
    %c0_14 = arith.constant 0 : index
    %45 = vector.load %arg3[%c0_12, %c0_13, %c0_14] : memref<1x8x128xf32, #tpu.memory_space<vmem>>, vector<1x8x128xf32>
    tpu.vector_store %arg3[%c0_12, %c0_13, %c0_14], %44 {strides = array<i32>} : memref<1x8x128xf32, #tpu.memory_space<vmem>>, vector<1x8x128xf32>,
    return
  }
  func.func @transform_0(%arg0: i32) -> (i32, i32) {
    %c0_i32 = arith.constant 0 : i32
    %c0_i32_0 = arith.constant 0 : i32
    return %arg0, %c0_i32 : i32, i32
  }
  func.func @transform_1(%arg0: i32) -> (i32, i32) {
    %c0_i32 = arith.constant 0 : i32
    %c0_i32_0 = arith.constant 0 : i32
    return %arg0, %c0_i32 : i32, i32
  }
  func.func @transform_2(%arg0: i32) -> (i32, i32, i32) {
    %c0_i32 = arith.constant 0 : i32
    %c0_i32_0 = arith.constant 0 : i32
    %c0_i32_1 = arith.constant 0 : i32
    return %arg0, %c0_i32, %c0_i32_0 : i32, i32, i32
  }
}

</mosaic_0001>

<llo_original>
// kernel: tpu_custom_call.1
$region0: #{tpu_custom_call.1}
  #allocation0 [shape = 'u32[]', space=smem, size = 0x4, offset = 0x4, fixed_abs, tag = 'smem constant byte address 0x4 - core index']
  #allocation1 [shape = 'u32[144,128]{1,0:T(1,128)}', space=vmem, size = 0x12000, scoped, tag = 'internal scratch']
  %s0 = inlined_call_operand.vmem [shape: f32[8,32], index: 0, kind: input, shape index: {}]
  %s1 = inlined_call_operand.vmem [shape: s32[8,1], index: 1, kind: input, shape index: {}]
  %s2 = inlined_call_operand.hbm [shape: f32[1,8,128], index: 2, kind: output, shape index: {}]
  %s3 = sld [smem:[#allocation0]]
  $region18: #{tpu_custom_call.1} parent=0
    _
  %s5 = ssub.s32 1, %s3
  %s6 = scalar_select 0, %s5, %s3
  $region1: #{tpu_custom_call.1} parent=0
    #allocation2 [shape = 'u8[4096]{0}', space=vmem, size = 0x1000, scoped, tag = 'output window, operand 0, single buffered']
    #allocation3 [shape = 's32[1]{0}', space=sflag, size = 0x4, scoped, tag = 'scoped memory for tpu_custom_call.1']
    %7 = vsyncpa [#allocation3], 0
    // Predicated region
    $region2: #{tpu_custom_call.1} parent=1 // pred_check
      _
    $region3: #{tpu_custom_call.1} parent=1 // pred_check_branch
      %9 = sbr.rel (0) target = $region5
    $region4: #{tpu_custom_call.1} parent=1 // pred_region
      _
    $region5: #{tpu_custom_call.1} parent=1 // pred_fallthru
      _
    // Predicated region
    $region6: #{tpu_custom_call.1} parent=1 // pred_check
      _
    $region7: #{tpu_custom_call.1} parent=1 // pred_check_branch
      %11 = sbr.rel (0) target = $region9
    $region8: #{tpu_custom_call.1} parent=1 // pred_region
      _
    $region9: #{tpu_custom_call.1} parent=1 // pred_fallthru
      _
    %v12 = vld [vmem:[%s0] sm:$0xff]
    %v13 = vld [vmem:[%s1] sm:$0xff]
    %v14 = vlaneseq
    %v15 = vand.u32 %v14, 127
    %16 = vset.pattern.permute.xlu0 0
    %17 = vperm.xlu0 %16, %v13
    %v18 = vpop.permute.xlu0 %17
    %vm19 = vcmp.eq.s32.totalorder %v15, %v18
    %v20 = vsel %vm19, %v12, 0.0
    %vm21 = vcmask 261120
    %v22 = vsel %vm21, %v20, 0.0
    %23 = vadd.xlane.f32.xlu0 %v22
    %v24 = vpop.xlane.xlu0 %23
    %v25 = vmul.f32 %v20, 2.0
    %v26 = vsub.f32 %v12, %v25
    %vm27 = vcmp.gt.f32.partialorder %v26, -1.0
    %v28 = vadd.f32 %v26, 2.0
    %v29 = vsel %vm27, %v28, 0.0
    %v30 = vsel %vm21, %v12, -inf
    %31 = vmax.xlane.f32.xlu0 %v30
    %v32 = vpop.xlane.xlu0 %31
    %v33 = vsub.f32 %v12, %v32
    %v34 = vmul.f32 %v33, 1.442695
    %v35 = vpow.pop %v34
    %v36 = vsel %vm21, %v35, 0.0
    %37 = vadd.xlane.f32.xlu0 %v36
    %v38 = vpop.xlane.xlu0 %37
    %v39 = vlog2.pop %v38
    %v40 = vmul.f32 %v39, 0.6931472
    %v41 = vadd.f32 %v40, %v32
    %v42 = vsub.f32 %v32, %v41
    %v43 = vadd.f32 %v40, %v42
    %v44 = vsub.f32 %v24, %v41
    %v45 = vsub.f32 %v43, %v44
    %v46 = vsel %vm21, %v29, 0.0
    %47 = vadd.xlane.f32.xlu0 %v46
    %v48 = vpop.xlane.xlu0 %47
    %v49 = vrot.slane %v48, 4
    %v50 = vadd.f32 %v48, %v49
    %v51 = vrot.slane %v50, 2
    %v52 = vadd.f32 %v50, %v51
    %v53 = vrot.slane %v52, 1
    %v54 = vadd.f32 %v52, %v53
    %s55 = vtos %v54
    %vm56 = vcmask 7168
    %v57 = vsel %vm56, %v45, 0.0
    %58 = vadd.xlane.f32.xlu0 %v57
    %v59 = vpop.xlane.xlu0 %58
    %v60 = vrot.slane %v59, 4
    %v61 = vadd.f32 %v59, %v60
    %v62 = vrot.slane %v61, 2
    %v63 = vadd.f32 %v61, %v62
    %v64 = vrot.slane %v63, 1
    %v65 = vadd.f32 %v63, %v64
    %s66 = vtos %v65
    %v67 = vlaneseq
    %v68 = vshrl.u32 %v67, 7
    %vm69 = vcmp.eq.s32.totalorder %v68, 0
    %v70 = vstv %s55
    %v71 = vstv %s66
    %v72 = vsel %vm69, %v70, %v71
    %73 = vst [vmem:[#allocation2] sm:$0xff] %v72
    // Predicated region
    $region10: #{tpu_custom_call.1} parent=1 // pred_check
      _
    $region11: #{tpu_custom_call.1} parent=1 // pred_check_branch
      %75 = sbr.rel (0) target = $region13
    $region12: #{tpu_custom_call.1} parent=1 // pred_region
      %s77 = ssub.s32 128, 128
      %78 = vsyncadd [#allocation3], %s77
      %s80 = sshll.u32 [#allocation2], 4
      %s81 = int_to_ptr.vmem [resolvable:$true] %s80
      %83 = dma.vmem_to_hbm [thread:$0]  %s81, 128, %s2, [#allocation3]
    $region13: #{tpu_custom_call.1} parent=1 // pred_fallthru
      _
    // Predicated region
    $region14: #{tpu_custom_call.1} parent=1 // pred_check
      _
    $region15: #{tpu_custom_call.1} parent=1 // pred_check_branch
      %85 = sbr.rel (0) target = $region17
    $region16: #{tpu_custom_call.1} parent=1 // pred_region
      %86 = dma.done [#allocation3], 128
    $region17: #{tpu_custom_call.1} parent=1 // pred_fallthru
      _
    %87 = vsyncpa [#allocation3], 1

</llo_original>
